<compile_context>
chip_gen: v6e
topology: v6e:2x2x1
jax: 0.10.0
libtpu: 0.0.40
codegen_flags: <defaults>
</compile_context>

<pallas_src>
import jax
import jax.numpy as jnp
from jax.experimental import pallas as pl
from jax.experimental.pallas import tpu as pltpu

WINDOW_SIZE = 100
HIDDEN_SIZE = 50
OUTPUT_SIZE = 1

LANE = 128            # hidden dim is padded to a lane multiple (50 -> 128)
DEFAULT_MAX_TB = 2048 # max batch-tile rows (working set stays a few MiB)
_SPLIT_THRESHOLD = 1024  # batches >= this get >=2 tiles (keep both v7x TCs fed)


def _round_up(n, m):
    return ((n + m - 1) // m) * m


def _choose_tiling(batch, max_tb=DEFAULT_MAX_TB):
    """Pick (tile_rows, padded_batch) so padding waste stays ~0 and large
    batches produce at least 2 grid tiles (v7x has 2 TensorCores)."""
    min_tiles = 2 if batch >= _SPLIT_THRESHOLD else 1
    num_tiles = max(min_tiles, pl.cdiv(batch, max_tb))
    tb = _round_up(pl.cdiv(batch, num_tiles), 8)   # sublane-aligned
    return tb, num_tiles * tb


def mlp_kernel(x_ref, w1_ref, b1_ref, w2_ref, b2_ref, w3_ref, b3_ref, o_ref):
    # One batch tile, fully fused in VMEM (no HBM round-trips between layers).
    # All math in f32; fc1/fc2 on the MXU, fc3 (output_size == 1) as a
    # weighted lane-reduction so the output store stays (TB, 1).
    # Padded hidden columns stay exactly 0: their weight columns/rows and
    # biases are 0 and relu(0) == 0.
    x = x_ref[...]                                                     # (TB, F) f32
    h1 = jnp.dot(x, w1_ref[...], preferred_element_type=jnp.float32) + b1_ref[...]
    h1 = jnp.maximum(h1, 0.0)                                          # (TB, Hp)
    h2 = jnp.dot(h1, w2_ref[...], preferred_element_type=jnp.float32) + b2_ref[...]
    h2 = jnp.maximum(h2, 0.0)                                          # (TB, Hp)
    out = jnp.sum(h2 * w3_ref[...], axis=-1, keepdims=True) + b3_ref[...]
    o_ref[...] = out                                                   # (TB, 1) f32


def prepare_params(params):
    """One-time (parameter-load-time) padding of the weights to lane-aligned
    hidden width. Weights stay f32 to match the PyTorch module's math."""
    w1, b1, w2, b2, w3, b3 = params
    F, H = w1.shape
    O = w3.shape[1]
    assert O == 1, "kernel's fc3 lane-reduction path assumes output_size == 1"
    Hp = _round_up(H, LANE)

    w1p = jnp.zeros((F, Hp), jnp.float32).at[:, :H].set(w1.astype(jnp.float32))
    b1p = jnp.zeros((1, Hp), jnp.float32).at[:, :H].set(b1.reshape(1, H))
    w2p = jnp.zeros((Hp, Hp), jnp.float32).at[:H, :H].set(w2.astype(jnp.float32))
    b2p = jnp.zeros((1, Hp), jnp.float32).at[:, :H].set(b2.reshape(1, H))
    w3p = jnp.zeros((1, Hp), jnp.float32).at[:, :H].set(w3.T.astype(jnp.float32))
    b3p = b3.reshape(1, 1).astype(jnp.float32)
    return (w1p, b1p, w2p, b2p, w3p, b3p)


def mlp_forward(x, prepared_params, *, max_tb=DEFAULT_MAX_TB):
    """x: (B, ...) flattened to (B, input_size), matching x.view(x.size(0), -1)."""
    B = x.shape[0]
    x2d = x.reshape(B, -1).astype(jnp.float32)
    F = x2d.shape[1]
    w1p, b1p, w2p, b2p, w3p, b3p = prepared_params
    assert w1p.shape[0] == F, "flattened input size does not match fc1 fan_in"
    Hp = w1p.shape[1]

    TB, B_pad = _choose_tiling(B, max_tb)
    if B_pad != B:
        x2d = jnp.pad(x2d, ((0, B_pad - B), (0, 0)))   # only batch rows, no lane pad

    grid = (B_pad // TB,)
    flops = 2 * B_pad * (F * Hp + Hp * Hp + Hp)
    bytes_accessed = (
        B_pad * F * 4                                    # f32 activations in
        + (w1p.size + w2p.size + w3p.size
           + b1p.size + b2p.size + b3p.size) * 4         # resident f32 weights/biases
        + B_pad * 4                                      # narrow f32 output
    )

    out_padded = pl.pallas_call(
        mlp_kernel,
        out_shape=jax.ShapeDtypeStruct((B_pad, 1), jnp.float32),
        grid=grid,
        in_specs=[
            pl.BlockSpec((TB, F), lambda i: (i, 0)),    # x: tiled over batch
            pl.BlockSpec((F, Hp), lambda i: (0, 0)),    # w1: resident (constant index)
            pl.BlockSpec((1, Hp), lambda i: (0, 0)),    # b1
            pl.BlockSpec((Hp, Hp), lambda i: (0, 0)),   # w2
            pl.BlockSpec((1, Hp), lambda i: (0, 0)),    # b2
            pl.BlockSpec((1, Hp), lambda i: (0, 0)),    # w3 (row form for lane reduce)
            pl.BlockSpec((1, 1), lambda i: (0, 0)),     # b3
        ],
        out_specs=pl.BlockSpec((TB, 1), lambda i: (i, 0)),
        compiler_params=pltpu.CompilerParams(
            dimension_semantics=("parallel",),          # shard batch tiles across TCs (v7x)
            vmem_limit_bytes=32 * 1024 * 1024,          # footprint is only a few MiB
        ),
        cost_estimate=pl.CostEstimate(
            flops=flops, transcendentals=0, bytes_accessed=bytes_accessed),
    )(x2d, w1p, b1p, w2p, b2p, w3p, b3p)

    return out_padded[:B]   # drop batch padding; output width is already exactly 1


def init_params(key, input_size=WINDOW_SIZE, hidden_size=HIDDEN_SIZE,
                output_size=OUTPUT_SIZE):
    """Deterministic init mimicking nn.Linear's U(-1/sqrt(fan_in), 1/sqrt(fan_in)).
    Weights are kept as (in, out) = transpose of PyTorch's (out, in)."""
    ks = jax.random.split(key, 6)

    def lin(kw, kb, fan_in, fan_out):
        bound = 1.0 / jnp.sqrt(jnp.float32(fan_in))
        w = jax.random.uniform(kw, (fan_in, fan_out), jnp.float32, -bound, bound)
        b = jax.random.uniform(kb, (1, fan_out), jnp.float32, -bound, bound)
        return w, b

    w1, b1 = lin(ks[0], ks[1], input_size, hidden_size)
    w2, b2 = lin(ks[2], ks[3], hidden_size, hidden_size)
    w3, b3 = lin(ks[4], ks[5], hidden_size, output_size)
    return (w1, b1, w2, b2, w3, b3)


def _reference(x, params):
    """Plain f32 JAX reference matching the PyTorch MLPNet forward."""
    w1, b1, w2, b2, w3, b3 = params
    xf = x.reshape(x.shape[0], -1).astype(jnp.float32)
    h1 = jnp.maximum(xf @ w1 + b1, 0.0)
    h2 = jnp.maximum(h1 @ w2 + b2, 0.0)
    return h2 @ w3 + b3


if __name__ == "__main__":
    key = jax.random.PRNGKey(0)
    k_x, k_x2, k_p = jax.random.split(key, 3)
    params = init_params(k_p)
    prepared = prepare_params(params)   # one-time weight padding (not per call)

    # Small case mirroring a sliding-window time series: (batch, WINDOW_SIZE, 1),
    # flattened to (batch, WINDOW_SIZE) by the forward.
    batch = 8
    x = jax.random.normal(k_x, (batch, WINDOW_SIZE, 1), dtype=jnp.float32)
    out = jax.block_until_ready(mlp_forward(x, prepared))
    assert out.shape == (batch, OUTPUT_SIZE)
    assert jnp.allclose(out, _reference(x, params), atol=1e-2, rtol=1e-2)

    # Larger, non-tile-aligned batch: exercises adaptive tiling and the 2-tile
    # (megacore-friendly) grid path with minimal batch padding (1030 -> 1040).
    batch_big = 1030
    x_big = jax.random.normal(k_x2, (batch_big, WINDOW_SIZE, 1), dtype=jnp.float32)
    out_big = jax.block_until_ready(mlp_forward(x_big, prepared))
    assert out_big.shape == (batch_big, OUTPUT_SIZE)
    assert jnp.allclose(out_big, _reference(x_big, params), atol=1e-2, rtol=1e-2)

    print("KERNEL_OK")
</pallas_src>

<mosaic_0001>
module attributes {stable_mosaic.version = 11 : i64} {
  func.func @mlp_kernel(%arg0: i32, %arg1: memref<8x100xf32, #tpu.memory_space<vmem>>, %arg2: memref<100x128xf32, #tpu.memory_space<vmem>>, %arg3: memref<1x128xf32, #tpu.memory_space<vmem>>, %arg4: memref<128x128xf32, #tpu.memory_space<vmem>>, %arg5: memref<1x128xf32, #tpu.memory_space<vmem>>, %arg6: memref<1x128xf32, #tpu.memory_space<vmem>>, %arg7: memref<1x1xf32, #tpu.memory_space<vmem>>, %arg8: memref<8x1xf32, #tpu.memory_space<vmem>>) attributes {dimension_semantics = [#tpu.dimension_semantics<parallel>], iteration_bounds = array<i64: 1>, scalar_prefetch = 0 : i64, scratch_operands = 0 : i64, tpu.core_type = #tpu.core_type<tc>, window_params = [{transform_indices = @transform_0, window_bounds = array<i64: 8, 100>}, {pipeline_mode = #tpu.pipeline_mode<synchronous>, transform_indices = @transform_1, window_bounds = array<i64: 100, 128>}, {pipeline_mode = #tpu.pipeline_mode<synchronous>, transform_indices = @transform_2, window_bounds = array<i64: 1, 128>}, {pipeline_mode = #tpu.pipeline_mode<synchronous>, transform_indices = @transform_3, window_bounds = array<i64: 128, 128>}, {pipeline_mode = #tpu.pipeline_mode<synchronous>, transform_indices = @transform_4, window_bounds = array<i64: 1, 128>}, {pipeline_mode = #tpu.pipeline_mode<synchronous>, transform_indices = @transform_5, window_bounds = array<i64: 1, 128>}, {pipeline_mode = #tpu.pipeline_mode<synchronous>, transform_indices = @transform_6, window_bounds = array<i64: 1, 1>}, {transform_indices = @transform_7, window_bounds = array<i64: 8, 1>}]} {
    %c0 = arith.constant 0 : index
    %c0_0 = arith.constant 0 : index
    %0 = vector.load %arg1[%c0, %c0_0] : memref<8x100xf32, #tpu.memory_space<vmem>>, vector<8x100xf32>
    %c0_1 = arith.constant 0 : index
    %c0_2 = arith.constant 0 : index
    %1 = vector.load %arg2[%c0_1, %c0_2] : memref<100x128xf32, #tpu.memory_space<vmem>>, vector<100x128xf32>
    %cst = arith.constant dense<0.000000e+00> : vector<8x128xf32>
    %2 = tpu.matmul %0, %1, %cst {dimension_numbers = #tpu.dot_dimension_numbers<[1], [0], [0], [1], [0, 0, 1, 1], [], []>} : vector<8x100xf32>, vector<100x128xf32>, vector<8x128xf32> -> vector<8x128xf32>
    %c0_3 = arith.constant 0 : index
    %c0_4 = arith.constant 0 : index
    %3 = vector.load %arg3[%c0_3, %c0_4] : memref<1x128xf32, #tpu.memory_space<vmem>>, vector<1x128xf32>
    %4 = vector.broadcast %3 : vector<1x128xf32> to vector<8x128xf32>
    %5 = arith.addf %2, %4 : vector<8x128xf32>
    %cst_5 = arith.constant 0.000000e+00 : f32
    %6 = vector.broadcast %cst_5 : f32 to vector<8x128xf32>
    %7 = arith.maximumf %5, %6 : vector<8x128xf32>
    %c0_6 = arith.constant 0 : index
    %c0_7 = arith.constant 0 : index
    %8 = vector.load %arg4[%c0_6, %c0_7] : memref<128x128xf32, #tpu.memory_space<vmem>>, vector<128x128xf32>
    %cst_8 = arith.constant dense<0.000000e+00> : vector<8x128xf32>
    %9 = tpu.matmul %7, %8, %cst_8 {dimension_numbers = #tpu.dot_dimension_numbers<[1], [0], [0], [1], [0, 0, 1, 1], [], []>} : vector<8x128xf32>, vector<128x128xf32>, vector<8x128xf32> -> vector<8x128xf32>
    %c0_9 = arith.constant 0 : index
    %c0_10 = arith.constant 0 : index
    %10 = vector.load %arg5[%c0_9, %c0_10] : memref<1x128xf32, #tpu.memory_space<vmem>>, vector<1x128xf32>
    %11 = vector.broadcast %10 : vector<1x128xf32> to vector<8x128xf32>
    %12 = arith.addf %9, %11 : vector<8x128xf32>
    %cst_11 = arith.constant 0.000000e+00 : f32
    %13 = vector.broadcast %cst_11 : f32 to vector<8x128xf32>
    %14 = arith.maximumf %12, %13 : vector<8x128xf32>
    %c0_12 = arith.constant 0 : index
    %c0_13 = arith.constant 0 : index
    %15 = vector.load %arg6[%c0_12, %c0_13] : memref<1x128xf32, #tpu.memory_space<vmem>>, vector<1x128xf32>
    %16 = vector.broadcast %15 : vector<1x128xf32> to vector<8x128xf32>
    %17 = arith.mulf %14, %16 : vector<8x128xf32>
    %cst_14 = arith.constant dense<0.000000e+00> : vector<8xf32>
    %18 = vector.multi_reduction <add>, %17, %cst_14 [1] : vector<8x128xf32> to vector<8xf32>
    %19 = vector.shape_cast %18 : vector<8xf32> to vector<8x1xf32>
    %c0_15 = arith.constant 0 : index
    %c0_16 = arith.constant 0 : index
    %20 = vector.load %arg7[%c0_15, %c0_16] : memref<1x1xf32, #tpu.memory_space<vmem>>, vector<1x1xf32>
    %21 = vector.broadcast %20 : vector<1x1xf32> to vector<8x1xf32>
    %22 = arith.addf %19, %21 : vector<8x1xf32>
    %c0_17 = arith.constant 0 : index
    %c0_18 = arith.constant 0 : index
    %23 = vector.load %arg8[%c0_17, %c0_18] : memref<8x1xf32, #tpu.memory_space<vmem>>, vector<8x1xf32>
    tpu.vector_store %arg8[%c0_17, %c0_18], %22 {strides = array<i32>} : memref<8x1xf32, #tpu.memory_space<vmem>>, vector<8x1xf32>,
    return
  }
  func.func @transform_0(%arg0: i32) -> (i32, i32) {
    %c0_i32 = arith.constant 0 : i32
    %c0_i32_0 = arith.constant 0 : i32
    return %arg0, %c0_i32 : i32, i32
  }
  func.func @transform_1(%arg0: i32) -> (i32, i32) {
    %c0_i32 = arith.constant 0 : i32
    %c0_i32_0 = arith.constant 0 : i32
    %c0_i32_1 = arith.constant 0 : i32
    return %c0_i32, %c0_i32_0 : i32, i32
  }
  func.func @transform_2(%arg0: i32) -> (i32, i32) {
    %c0_i32 = arith.constant 0 : i32
    %c0_i32_0 = arith.constant 0 : i32
    %c0_i32_1 = arith.constant 0 : i32
    return %c0_i32, %c0_i32_0 : i32, i32
  }
  func.func @transform_3(%arg0: i32) -> (i32, i32) {
    %c0_i32 = arith.constant 0 : i32
    %c0_i32_0 = arith.constant 0 : i32
    %c0_i32_1 = arith.constant 0 : i32
    return %c0_i32, %c0_i32_0 : i32, i32
  }
  func.func @transform_4(%arg0: i32) -> (i32, i32) {
    %c0_i32 = arith.constant 0 : i32
    %c0_i32_0 = arith.constant 0 : i32
    %c0_i32_1 = arith.constant 0 : i32
    return %c0_i32, %c0_i32_0 : i32, i32
  }
  func.func @transform_5(%arg0: i32) -> (i32, i32) {
    %c0_i32 = arith.constant 0 : i32
    %c0_i32_0 = arith.constant 0 : i32
    %c0_i32_1 = arith.constant 0 : i32
    return %c0_i32, %c0_i32_0 : i32, i32
  }
  func.func @transform_6(%arg0: i32) -> (i32, i32) {
    %c0_i32 = arith.constant 0 : i32
    %c0_i32_0 = arith.constant 0 : i32
    %c0_i32_1 = arith.constant 0 : i32
    return %c0_i32, %c0_i32_0 : i32, i32
  }
  func.func @transform_7(%arg0: i32) -> (i32, i32) {
    %c0_i32 = arith.constant 0 : i32
    %c0_i32_0 = arith.constant 0 : i32
    return %arg0, %c0_i32 : i32, i32
  }
}

</mosaic_0001>

<llo_original>
// kernel: tpu_custom_call.1
$region0: #{tpu_custom_call.1}
  #allocation0 [shape = 'u32[]', space=smem, size = 0x4, offset = 0x4, fixed_abs, tag = 'smem constant byte address 0x4 - core index']
  #allocation1 [shape = 'u32[144,128]{1,0:T(1,128)}', space=vmem, size = 0x12000, scoped, tag = 'internal scratch']
  #allocation2 [shape = 'f32[1,1]{1,0:T(1,128)S(1)}', space=vmem, size = 0x200, scoped, tag = 'scoped memory for tpu_custom_call.1']
  %s0 = inlined_call_operand.hbm [shape: f32[8,100], index: 0, kind: input, shape index: {}]
  %s1 = inlined_call_operand.hbm [shape: f32[100,128], index: 1, kind: input, shape index: {}]
  %s2 = inlined_call_operand.vmem [shape: f32[1,128], index: 2, kind: input, shape index: {}]
  %s3 = inlined_call_operand.hbm [shape: f32[128,128], index: 3, kind: input, shape index: {}]
  %s4 = inlined_call_operand.vmem [shape: f32[1,128], index: 4, kind: input, shape index: {}]
  %s5 = inlined_call_operand.vmem [shape: f32[1,128], index: 5, kind: input, shape index: {}]
  %s6 = inlined_call_operand.<no memory space> [shape: f32[1,1], index: 6, kind: input, shape index: {}]
  %s7 = inlined_call_operand.vmem [shape: f32[8,1], index: 7, kind: output, shape index: {}]
  %s8 = sld [smem:[#allocation0]]
  $region50: #{tpu_custom_call.1} parent=0
    _
  %s10 = ssub.s32 1, %s8
  %s11 = scalar_select 0, %s10, %s8
  %v12 = vstv %s6
  %13 = vst [vmem:[#allocation2] sm:$0x1] %v12
  $region1: #{tpu_custom_call.1} parent=0
    #allocation3 [shape = 'u8[4096]{0}', space=vmem, size = 0x1000, scoped, tag = 'input window, operand 0, single buffered']
    #allocation4 [shape = 's32[1]{0}', space=sflag, size = 0x4, scoped, tag = 'scoped memory for tpu_custom_call.1']
    #allocation5 [shape = 'u8[53248]{0}', space=vmem, size = 0xd000, scoped, tag = 'input window, operand 1, single buffered']
    #allocation6 [shape = 's32[1]{0}', space=sflag, size = 0x4, scoped, tag = 'scoped memory for tpu_custom_call.1']
    #allocation7 [shape = 'u8[65536]{0}', space=vmem, size = 0x10000, scoped, tag = 'input window, operand 3, single buffered']
    %14 = vsyncpa [#allocation4], 0
    %15 = vsyncpa [#allocation6], 0
    // Predicated region
    $region2: #{tpu_custom_call.1} parent=1 // pred_check
      _
    $region3: #{tpu_custom_call.1} parent=1 // pred_check_branch
      %17 = sbr.rel (0) target = $region5
    $region4: #{tpu_custom_call.1} parent=1 // pred_region
      %s19 = ssub.s32 128, 128
      %20 = vsyncadd [#allocation4], %s19
      %s22 = sshll.u32 [#allocation3], 4
      %s23 = int_to_ptr.vmem [resolvable:$true] %s22
      %25 = dma.hbm_to_vmem [thread:$0]  %s0, 128, %s23, [#allocation4]
    $region5: #{tpu_custom_call.1} parent=1 // pred_fallthru
      _
    // Predicated region
    $region6: #{tpu_custom_call.1} parent=1 // pred_check
      _
    $region7: #{tpu_custom_call.1} parent=1 // pred_check_branch
      %27 = sbr.rel (0) target = $region9
    $region8: #{tpu_custom_call.1} parent=1 // pred_region
      %s29 = ssub.s32 1664, 1664
      %30 = vsyncadd [#allocation6], %s29
      %s31 = sshll.u32 [#allocation5], 4
      %s32 = int_to_ptr.vmem [resolvable:$true] %s31
      %37 = dma.hbm_to_vmem [thread:$0]  %s1, 1664, %s32, [#allocation6], 128, 128, 8
    $region9: #{tpu_custom_call.1} parent=1 // pred_fallthru
      _
    // Predicated region
    $region10: #{tpu_custom_call.1} parent=1 // pred_check
      _
    $region11: #{tpu_custom_call.1} parent=1 // pred_check_branch
      %39 = sbr.rel (0) target = $region13
    $region12: #{tpu_custom_call.1} parent=1 // pred_region
      _
    $region13: #{tpu_custom_call.1} parent=1 // pred_fallthru
      _
    // Predicated region
    $region14: #{tpu_custom_call.1} parent=1 // pred_check
      _
    $region15: #{tpu_custom_call.1} parent=1 // pred_check_branch
      %41 = sbr.rel (0) target = $region17
    $region16: #{tpu_custom_call.1} parent=1 // pred_region
      %s43 = ssub.s32 2048, 2048
      %44 = vsyncadd [#allocation6], %s43
      %s45 = sshll.u32 [#allocation7], 4
      %s46 = int_to_ptr.vmem [resolvable:$true] %s45
      %51 = dma.hbm_to_vmem [thread:$0]  %s3, 2048, %s46, [#allocation6], 128, 128, 8
    $region17: #{tpu_custom_call.1} parent=1 // pred_fallthru
      _
    // Predicated region
    $region18: #{tpu_custom_call.1} parent=1 // pred_check
      _
    $region19: #{tpu_custom_call.1} parent=1 // pred_check_branch
      %53 = sbr.rel (0) target = $region21
    $region20: #{tpu_custom_call.1} parent=1 // pred_region
      _
    $region21: #{tpu_custom_call.1} parent=1 // pred_fallthru
      _
    // Predicated region
    $region22: #{tpu_custom_call.1} parent=1 // pred_check
      _
    $region23: #{tpu_custom_call.1} parent=1 // pred_check_branch
      %55 = sbr.rel (0) target = $region25
    $region24: #{tpu_custom_call.1} parent=1 // pred_region
      _
    $region25: #{tpu_custom_call.1} parent=1 // pred_fallthru
      _
    // Predicated region
    $region26: #{tpu_custom_call.1} parent=1 // pred_check
      _
    $region27: #{tpu_custom_call.1} parent=1 // pred_check_branch
      %57 = sbr.rel (0) target = $region29
    $region28: #{tpu_custom_call.1} parent=1 // pred_region
      _
    $region29: #{tpu_custom_call.1} parent=1 // pred_fallthru
      _
    // Predicated region
    $region30: #{tpu_custom_call.1} parent=1 // pred_check
      _
    $region31: #{tpu_custom_call.1} parent=1 // pred_check_branch
      %59 = sbr.rel (0) target = $region33
    $region32: #{tpu_custom_call.1} parent=1 // pred_region
      %60 = dma.done [#allocation4], 128
    $region33: #{tpu_custom_call.1} parent=1 // pred_fallthru
      _
    // Predicated region
    $region34: #{tpu_custom_call.1} parent=1 // pred_check
      _
    $region35: #{tpu_custom_call.1} parent=1 // pred_check_branch
      %62 = sbr.rel (0) target = $region37
    $region36: #{tpu_custom_call.1} parent=1 // pred_region
      %63 = dma.done [#allocation6], 1664
    $region37: #{tpu_custom_call.1} parent=1 // pred_fallthru
      _
    // Predicated region
    $region38: #{tpu_custom_call.1} parent=1 // pred_check
      _
    $region39: #{tpu_custom_call.1} parent=1 // pred_check_branch
      %65 = sbr.rel (0) target = $region41
    $region40: #{tpu_custom_call.1} parent=1 // pred_region
      %66 = dma.done [#allocation6], 2048
    $region41: #{tpu_custom_call.1} parent=1 // pred_fallthru
      _
    %v67 = vld [vmem:[#allocation3] sm:$0xff]
    %v68 = vld [vmem:[#allocation5] sm:$0xff]
    %v69 = vld [vmem:[#allocation5 + $0x8] sm:$0xff]
    %v70 = vld [vmem:[#allocation5 + $0x10] sm:$0xff]
    %v71 = vld [vmem:[#allocation5 + $0x18] sm:$0xff]
    %v72 = vld [vmem:[#allocation5 + $0x20] sm:$0xff]
    %v73 = vld [vmem:[#allocation5 + $0x28] sm:$0xff]
    %v74 = vld [vmem:[#allocation5 + $0x30] sm:$0xff]
    %v75 = vld [vmem:[#allocation5 + $0x38] sm:$0xff]
    %v76 = vld [vmem:[#allocation5 + $0x40] sm:$0xff]
    %v77 = vld [vmem:[#allocation5 + $0x48] sm:$0xff]
    %v78 = vld [vmem:[#allocation5 + $0x50] sm:$0xff]
    %v79 = vld [vmem:[#allocation5 + $0x58] sm:$0xff]
    %v80 = vld [vmem:[#allocation5 + $0x60] sm:$0xf]
    %v81 = vld [vmem:[%s2] sm:$0x1]
    %v83 = vlaneseq
    %v84 = vshrl.u32 %v83, 7
    %v85 = vsub.s32 0, %v84
    %v86 = vrot.slane %v81, %v85
    %vm88 = vcmask 818176
    %v90 = vsel %vm88, %v67, 0
    %vm92 = vcmask 1043456
    %v94 = vsel %vm92, %v80, 0
    %96 = vmatprep.subr.mxu0 0.0
    %97 = vmatpush1.msra.mxu0 0.0
    %98 = vmatprep.subr.mxu0 0.0
    %99 = vmatpush1.msra.mxu0 0.0
    %100 = vmatprep.subr.mxu0 0.0
    %101 = vmatpush1.msra.mxu0 0.0
    %102 = vmatprep.subr.mxu0 0.0
    %103 = vmatpush1.msra.mxu0 %v94
    %104 = vmatprep.subr.mxu0 0.0
    %105 = vmatpush1.msra.mxu0 %v79
    %106 = vmatprep.subr.mxu0 0.0
    %107 = vmatpush1.msra.mxu0 %v78
    %108 = vmatprep.subr.mxu0 0.0
    %109 = vmatpush1.msra.mxu0 %v77
    %110 = vmatprep.subr.mxu0 0.0
    %111 = vmatpush1.msra.mxu0 %v76
    %112 = vmatprep.subr.mxu0 0.0
    %113 = vmatpush1.msra.mxu0 %v75
    %114 = vmatprep.subr.mxu0 0.0
    %115 = vmatpush1.msra.mxu0 %v74
    %116 = vmatprep.subr.mxu0 0.0
    %117 = vmatpush1.msra.mxu0 %v73
    %118 = vmatprep.subr.mxu0 0.0
    %119 = vmatpush1.msra.mxu0 %v72
    %120 = vmatprep.subr.mxu0 0.0
    %121 = vmatpush1.msra.mxu0 %v71
    %122 = vmatprep.subr.mxu0 0.0
    %123 = vmatpush1.msra.mxu0 %v70
    %124 = vmatprep.subr.mxu0 0.0
    %125 = vmatpush1.msra.mxu0 %v69
    %126 = vmatprep.subr.mxu0 0.0
    %127 = vmatpush1.msra.mxu0 %v68
    %128 = vmatprep.subr.mxu0 0.0
    %129 = vmatpush2.msra.mxu0 0.0
    %130 = vmatprep.subr.mxu0 0.0
    %131 = vmatpush2.msra.mxu0 0.0
    %132 = vmatprep.subr.mxu0 0.0
    %133 = vmatpush2.msra.mxu0 0.0
    %134 = vmatprep.subr.mxu0 0.0
    %135 = vmatpush2.msra.mxu0 0.0
    %136 = vmatprep.subr.mxu0 0.0
    %137 = vmatpush2.msra.mxu0 0.0
    %138 = vmatprep.subr.mxu0 0.0
    %139 = vmatpush2.msra.mxu0 0.0
    %140 = vmatprep.subr.mxu0 0.0
    %141 = vmatpush2.msra.mxu0 0.0
    %142 = vmatprep.subr.mxu0 0.0
    %143 = vmatpush2.msra.mxu0 0.0
    %144 = vmatprep.subr.mxu0 0.0
    %145 = vmatpush2.msra.mxu0 0.0
    %146 = vmatprep.subr.mxu0 0.0
    %147 = vmatpush2.msra.mxu0 0.0
    %148 = vmatprep.subr.mxu0 0.0
    %149 = vmatpush2.msra.mxu0 0.0
    %150 = vmatprep.subr.mxu0 0.0
    %151 = vmatpush2.msra.mxu0 0.0
    %152 = vmatprep.subr.mxu0 0.0
    %153 = vmatpush2.msra.mxu0 0.0
    %154 = vmatprep.subr.mxu0 0.0
    %155 = vmatpush2.msra.mxu0 0.0
    %156 = vmatprep.subr.mxu0 0.0
    %157 = vmatpush2.msra.mxu0 0.0
    %158 = vmatprep.subr.mxu0 0.0
    %159 = vmatpush2.msra.mxu0 0.0
    %160 = vmatprep.mubr.f32.mxu0 0.0
    %161 = vmatmul.mubr.f32.gmra.mxu0 %v90
    %v162 = vpop.f32.mrf.mxu0
    %v163 = vadd.f32 %v86, %v162
    %v164 = vpop.f32.mrf.mxu0
    %165 = vdwg.mxu0
    %v166 = vmax.f32 %v163, 0.0
    %v167 = vld [vmem:[#allocation7] sm:$0xff]
    %v168 = vld [vmem:[#allocation7 + $0x8] sm:$0xff]
    %v169 = vld [vmem:[#allocation7 + $0x10] sm:$0xff]
    %v170 = vld [vmem:[#allocation7 + $0x18] sm:$0xff]
    %v171 = vld [vmem:[#allocation7 + $0x20] sm:$0xff]
    %v172 = vld [vmem:[#allocation7 + $0x28] sm:$0xff]
    %v173 = vld [vmem:[#allocation7 + $0x30] sm:$0xff]
    %v174 = vld [vmem:[#allocation7 + $0x38] sm:$0xff]
    %v175 = vld [vmem:[#allocation7 + $0x40] sm:$0xff]
    %v176 = vld [vmem:[#allocation7 + $0x48] sm:$0xff]
    %v177 = vld [vmem:[#allocation7 + $0x50] sm:$0xff]
    %v178 = vld [vmem:[#allocation7 + $0x58] sm:$0xff]
    %v179 = vld [vmem:[#allocation7 + $0x60] sm:$0xff]
    %v180 = vld [vmem:[#allocation7 + $0x68] sm:$0xff]
    %v181 = vld [vmem:[#allocation7 + $0x70] sm:$0xff]
    %v182 = vld [vmem:[#allocation7 + $0x78] sm:$0xff]
    %v183 = vld [vmem:[%s4] sm:$0x1]
    %v185 = vlaneseq
    %v186 = vshrl.u32 %v185, 7
    %v187 = vsub.s32 0, %v186
    %v188 = vrot.slane %v183, %v187
    %190 = vmatprep.subr.mxu0 0.0
    %191 = vmatpush1.msra.mxu0 %v182
    %192 = vmatprep.subr.mxu0 0.0
    %193 = vmatpush1.msra.mxu0 %v181
    %194 = vmatprep.subr.mxu0 0.0
    %195 = vmatpush1.msra.mxu0 %v180
    %196 = vmatprep.subr.mxu0 0.0
    %197 = vmatpush1.msra.mxu0 %v179
    %198 = vmatprep.subr.mxu0 0.0
    %199 = vmatpush1.msra.mxu0 %v178
    %200 = vmatprep.subr.mxu0 0.0
    %201 = vmatpush1.msra.mxu0 %v177
    %202 = vmatprep.subr.mxu0 0.0
    %203 = vmatpush1.msra.mxu0 %v176
    %204 = vmatprep.subr.mxu0 0.0
    %205 = vmatpush1.msra.mxu0 %v175
    %206 = vmatprep.subr.mxu0 0.0
    %207 = vmatpush1.msra.mxu0 %v174
    %208 = vmatprep.subr.mxu0 0.0
    %209 = vmatpush1.msra.mxu0 %v173
    %210 = vmatprep.subr.mxu0 0.0
    %211 = vmatpush1.msra.mxu0 %v172
    %212 = vmatprep.subr.mxu0 0.0
    %213 = vmatpush1.msra.mxu0 %v171
    %214 = vmatprep.subr.mxu0 0.0
    %215 = vmatpush1.msra.mxu0 %v170
    %216 = vmatprep.subr.mxu0 0.0
    %217 = vmatpush1.msra.mxu0 %v169
    %218 = vmatprep.subr.mxu0 0.0
    %219 = vmatpush1.msra.mxu0 %v168
    %220 = vmatprep.subr.mxu0 0.0
    %221 = vmatpush1.msra.mxu0 %v167
    %222 = vmatprep.subr.mxu0 0.0
    %223 = vmatpush2.msra.mxu0 0.0
    %224 = vmatprep.subr.mxu0 0.0
    %225 = vmatpush2.msra.mxu0 0.0
    %226 = vmatprep.subr.mxu0 0.0
    %227 = vmatpush2.msra.mxu0 0.0
    %228 = vmatprep.subr.mxu0 0.0
    %229 = vmatpush2.msra.mxu0 0.0
    %230 = vmatprep.subr.mxu0 0.0
    %231 = vmatpush2.msra.mxu0 0.0
    %232 = vmatprep.subr.mxu0 0.0
    %233 = vmatpush2.msra.mxu0 0.0
    %234 = vmatprep.subr.mxu0 0.0
    %235 = vmatpush2.msra.mxu0 0.0
    %236 = vmatprep.subr.mxu0 0.0
    %237 = vmatpush2.msra.mxu0 0.0
    %238 = vmatprep.subr.mxu0 0.0
    %239 = vmatpush2.msra.mxu0 0.0
    %240 = vmatprep.subr.mxu0 0.0
    %241 = vmatpush2.msra.mxu0 0.0
    %242 = vmatprep.subr.mxu0 0.0
    %243 = vmatpush2.msra.mxu0 0.0
    %244 = vmatprep.subr.mxu0 0.0
    %245 = vmatpush2.msra.mxu0 0.0
    %246 = vmatprep.subr.mxu0 0.0
    %247 = vmatpush2.msra.mxu0 0.0
    %248 = vmatprep.subr.mxu0 0.0
    %249 = vmatpush2.msra.mxu0 0.0
    %250 = vmatprep.subr.mxu0 0.0
    %251 = vmatpush2.msra.mxu0 0.0
    %252 = vmatprep.subr.mxu0 0.0
    %253 = vmatpush2.msra.mxu0 0.0
    %254 = vmatprep.mubr.f32.mxu0 0.0
    %255 = vmatmul.mubr.f32.gmra.mxu0 %v166
    %v256 = vpop.f32.mrf.mxu0
    %v257 = vadd.f32 %v188, %v256
    %v258 = vpop.f32.mrf.mxu0
    %259 = vdwg.mxu0
    %v260 = vmax.f32 %v257, 0.0
    %v261 = vld [vmem:[%s5] sm:$0x1]
    %v263 = vlaneseq
    %v264 = vshrl.u32 %v263, 7
    %v265 = vsub.s32 0, %v264
    %v266 = vrot.slane %v261, %v265
    %v268 = vmul.f32 %v260, %v266
    %269 = vadd.xlane.f32.xlu0 %v268
    %v270 = vpop.xlane.xlu0 %269
    %v271 = vld [vmem:[#allocation2] sm:$0x1]
    %v273 = vlaneseq
    %v274 = vshrl.u32 %v273, 7
    %v275 = vsub.s32 0, %v274
    %v276 = vrot.slane %v271, %v275
    %v278 = vadd.f32 %v270, %v276
    %vm279 = vcmask 7168
    %280 = vst.msk [vmem:[%s7] sm:$0xff] %vm279, %v278
    // Predicated region
    $region42: #{tpu_custom_call.1} parent=1 // pred_check
      _
    $region43: #{tpu_custom_call.1} parent=1 // pred_check_branch
      %282 = sbr.rel (0) target = $region45
    $region44: #{tpu_custom_call.1} parent=1 // pred_region
      _
    $region45: #{tpu_custom_call.1} parent=1 // pred_fallthru
      _
    // Predicated region
    $region46: #{tpu_custom_call.1} parent=1 // pred_check
      _
    $region47: #{tpu_custom_call.1} parent=1 // pred_check_branch
      %284 = sbr.rel (0) target = $region49
    $region48: #{tpu_custom_call.1} parent=1 // pred_region
      _
    $region49: #{tpu_custom_call.1} parent=1 // pred_fallthru
      _
    %285 = vsyncpa [#allocation4], 1
    %286 = vsyncpa [#allocation6], 1

</llo_original>
